<compile_context>
chip_gen: v5e
topology: v5e:2x2
jax: 0.10.0
libtpu: 0.0.40
codegen_flags: <defaults>
</compile_context>

<pallas_src>
import functools

import jax
import jax.numpy as jnp
from jax.experimental import pallas as pl
from jax.experimental.pallas import tpu as pltpu


def _token_emb_kernel(ids_ref, emb_ref, *rest, num_embeddings, rare_id,
                      has_adapter):
    if has_adapter:
        wa_ref, ba_ref, o_ref = rest
    else:
        (o_ref,) = rest

    ids = ids_ref[...]                                   # (TN, 1) int32
    tn = ids.shape[0]

    # 1) out-of-vocabulary ids -> rare_id (torch's data-dependent
    #    `if torch.any(unkmask)` applied unconditionally -- identical result)
    ids = jnp.where(ids >= num_embeddings, jnp.int32(rare_id), ids)

    # 2)+3) embedding gather (unkmap already folded into the table) as a
    #    one-hot @ table MXU matmul.  One-hot is built in the table's dtype
    #    (exact 0/1, no up-cast of the table), f32 accumulation keeps the
    #    selection exact.
    iota_v = jax.lax.broadcasted_iota(jnp.int32, (tn, num_embeddings), 1)
    sel = (ids == iota_v).astype(emb_ref.dtype)          # (TN, V)
    out = jnp.dot(sel, emb_ref[...],
                  preferred_element_type=jnp.float32)    # (TN, D) f32

    # 4) optional adapter Linear (second MXU matmul, f32 accumulation)
    if has_adapter:
        lhs = out if wa_ref.dtype == jnp.float32 else out.astype(wa_ref.dtype)
        out = jnp.dot(lhs, wa_ref[...], preferred_element_type=jnp.float32)
        out = out + ba_ref[...].astype(jnp.float32)

    o_ref[...] = out.astype(o_ref.dtype)


def _round_up(x, m):
    return pl.cdiv(x, m) * m


def token_emb(ids, emb_w, *, unkmap=None, adapt_w=None, adapt_b=None,
              rare_id=0, tn=256, fuse_adapter=False, lane_pad=128):
    """Pallas TokenEmb forward.

    ids     : int array, any shape (e.g. (B, T))
    emb_w   : (V, D_in) embedding table
    unkmap  : optional (V,) int32 remap table (identity if None)
    adapt_w : optional (D_in, D_out) adapter weight (torch Linear weight.T)
    adapt_b : optional (D_out,) adapter bias
    tn      : token tile; default 256 (v6e/v7x MXU width); use 128 on v5e.
    """
    v, d_in = emb_w.shape

    # --- fold the rare-token remap into the table (done once, outside the
    #     kernel):  folded[j] = emb_w[unkmap[j]]  =>  folded[ids] == emb_w[unkmap[ids]]
    table = emb_w if unkmap is None else jnp.take(
        emb_w, unkmap.astype(jnp.int32), axis=0)

    has_adapter = adapt_w is not None
    out_dtype = (emb_w.dtype if adapt_w is None
                 else jnp.result_type(emb_w.dtype, adapt_w.dtype))

    if has_adapter and fuse_adapter:
        # Forward-only fusion: onehot @ (emb @ W + b) == (onehot @ emb) @ W + b
        table = (jnp.dot(table, adapt_w, preferred_element_type=jnp.float32)
                 + adapt_b).astype(out_dtype)
        has_adapter = False

    d_feat = adapt_w.shape[1] if has_adapter else table.shape[1]

    # --- lane-dense output: pad the feature dim that feeds the output to a
    #     multiple of 128 (unmasked vst), slice the pad off afterwards.
    d_pad = _round_up(d_feat, lane_pad)
    if not has_adapter:
        if d_pad != table.shape[1]:
            table = jnp.pad(table, ((0, 0), (0, d_pad - table.shape[1])))
        wa_p = ba_p = None
    else:
        wa_p = (adapt_w if d_pad == d_feat
                else jnp.pad(adapt_w, ((0, 0), (0, d_pad - d_feat))))
        ba_p = (adapt_b if d_pad == d_feat
                else jnp.pad(adapt_b, (0, d_pad - d_feat))).reshape(1, d_pad)

    # --- token tiling (sublane-aligned; don't over-pad tiny inputs).
    lead_shape = ids.shape
    ids_flat = ids.reshape(-1).astype(jnp.int32)
    n = ids_flat.shape[0]
    tn = max(8, min(int(tn), _round_up(n, 8)))
    tn = _round_up(tn, 8)
    n_pad = _round_up(n, tn)
    ids2 = jnp.zeros((n_pad, 1), jnp.int32).at[:n, 0].set(ids_flat)
    # NOTE(v7x): for real workloads keep n_pad//tn a multiple of 2 so both
    # TensorCores get balanced work under dimension_semantics=("parallel",).

    in_arrays = [ids2, table]
    in_specs = [
        pl.BlockSpec((tn, 1), lambda i: (i, 0)),                 # ids (tiled)
        pl.BlockSpec(table.shape, lambda i: (0, 0),              # table (resident,
                     pipeline_mode=pl.Buffered(1)),              #  single-buffered)
    ]
    if has_adapter:
        in_arrays += [wa_p, ba_p]
        in_specs += [
            pl.BlockSpec(wa_p.shape, lambda i: (0, 0),
                         pipeline_mode=pl.Buffered(1)),
            pl.BlockSpec(ba_p.shape, lambda i: (0, 0),
                         pipeline_mode=pl.Buffered(1)),
        ]

    # VMEM budget from the actual resident footprint (+ headroom).
    def _nbytes(a):
        return int(a.size) * a.dtype.itemsize
    resident = _nbytes(table) + (
        _nbytes(wa_p) + _nbytes(ba_p) if has_adapter else 0)
    streamed = 2 * (tn * 4 + tn * d_pad * jnp.dtype(out_dtype).itemsize)
    vmem_limit = int(min(100 << 20,
                         max(16 << 20, 2 * (resident + streamed) + (4 << 20))))

    kernel = functools.partial(_token_emb_kernel, num_embeddings=v,
                               rare_id=int(rare_id), has_adapter=has_adapter)

    out = pl.pallas_call(
        kernel,
        out_shape=jax.ShapeDtypeStruct((n_pad, d_pad), out_dtype),
        grid_spec=pltpu.PrefetchScalarGridSpec(
            num_scalar_prefetch=0,
            grid=(n_pad // tn,),
            in_specs=in_specs,
            out_specs=pl.BlockSpec((tn, d_pad), lambda i: (i, 0)),
        ),
        compiler_params=pltpu.CompilerParams(
            dimension_semantics=("parallel",),
            vmem_limit_bytes=vmem_limit),
    )(*in_arrays)

    return out[:n, :d_feat].reshape(*lead_shape, d_feat)


def token_emb_reference(ids, emb_w, *, unkmap=None, adapt_w=None,
                        adapt_b=None, rare_id=0):
    v = emb_w.shape[0]
    ids = jnp.where(ids >= v, rare_id, ids)
    if unkmap is not None:
        ids = unkmap[ids]
    out = emb_w[ids]
    if adapt_w is not None:
        out = out @ adapt_w + adapt_b
    return out


if __name__ == "__main__":
    key = jax.random.PRNGKey(0)
    k_ids, k_emb, k_wa, k_ba = jax.random.split(key, 4)

    B, T = 2, 8
    V, D_IN, D_OUT = 32, 32, 64
    rare_token_ids = {3, 7, 11}
    rare_id = 1

    # token ids, with deliberate out-of-vocab and rare-token entries
    ids = jax.random.randint(k_ids, (B, T), 0, V, dtype=jnp.int32)
    ids = ids.at[0, 2].set(V + 5)        # OOV -> rare_id
    ids = ids.at[1, 6].set(V + 40)       # OOV -> rare_id
    ids = ids.at[0, 0].set(3)            # rare token -> unkmap -> rare_id

    # embedding table: TokenEmb.init_params => U(-0.1, 0.1), row 0 zeroed
    emb_w = jax.random.uniform(k_emb, (V, D_IN), jnp.float32, -0.1, 0.1)
    emb_w = emb_w.at[0].set(0.0)

    # unkmap buffer built as in _do_rare(): identity, rare ids -> rare_id
    unkmap = jnp.arange(V, dtype=jnp.int32)
    for rid in sorted(rare_token_ids):
        unkmap = unkmap.at[rid].set(rare_id)

    # adapter Linear(D_IN, D_OUT): torch default init U(-1/sqrt(fan_in), +)
    bound = 1.0 / (D_IN ** 0.5)
    adapt_w = jax.random.uniform(k_wa, (D_IN, D_OUT), jnp.float32, -bound, bound)
    adapt_b = jax.random.uniform(k_ba, (D_OUT,), jnp.float32, -bound, bound)

    # full path: OOV clamp + unkmap + embedding + adapter (in-kernel matmul)
    out = jax.block_until_ready(
        token_emb(ids, emb_w, unkmap=unkmap, adapt_w=adapt_w,
                  adapt_b=adapt_b, rare_id=rare_id))
    ref = token_emb_reference(ids, emb_w, unkmap=unkmap, adapt_w=adapt_w,
                              adapt_b=adapt_b, rare_id=rare_id)
    assert out.shape == (B, T, D_OUT) and out.dtype == jnp.float32
    assert jnp.allclose(out, ref, atol=1e-5, rtol=1e-5), "adapter path mismatch"

    # fused-adapter path (adapter folded into the table in the wrapper)
    out_f = jax.block_until_ready(
        token_emb(ids, emb_w, unkmap=unkmap, adapt_w=adapt_w,
                  adapt_b=adapt_b, rare_id=rare_id, fuse_adapter=True))
    assert out_f.shape == (B, T, D_OUT)
    assert jnp.allclose(out_f, ref, atol=1e-4, rtol=1e-4), "fused path mismatch"

    # no-adapter / no-unkmap path (adapter is None when adapt_dims match)
    out2 = jax.block_until_ready(token_emb(ids, emb_w, rare_id=rare_id))
    ref2 = token_emb_reference(ids, emb_w, rare_id=rare_id)
    assert out2.shape == (B, T, D_IN)
    assert jnp.allclose(out2, ref2, atol=1e-5, rtol=1e-5), "plain path mismatch"

    print("KERNEL_OK")
</pallas_src>

<mosaic_0001>
module attributes {stable_mosaic.version = 11 : i64} {
  func.func @_token_emb_kernel(%arg0: i32, %arg1: memref<16x1xi32, #tpu.memory_space<vmem>>, %arg2: memref<32x32xf32, #tpu.memory_space<vmem>>, %arg3: memref<32x128xf32, #tpu.memory_space<vmem>>, %arg4: memref<1x128xf32, #tpu.memory_space<vmem>>, %arg5: memref<16x128xf32, #tpu.memory_space<vmem>>) attributes {dimension_semantics = [#tpu.dimension_semantics<parallel>], iteration_bounds = array<i64: 1>, scalar_prefetch = 0 : i64, scratch_operands = 0 : i64, tpu.core_type = #tpu.core_type<tc>, window_params = [{transform_indices = @transform_0, window_bounds = array<i64: 16, 1>}, {pipeline_mode = #tpu.pipeline_mode<synchronous>, transform_indices = @transform_1, window_bounds = array<i64: 32, 32>}, {pipeline_mode = #tpu.pipeline_mode<synchronous>, transform_indices = @transform_2, window_bounds = array<i64: 32, 128>}, {pipeline_mode = #tpu.pipeline_mode<synchronous>, transform_indices = @transform_3, window_bounds = array<i64: 1, 128>}, {transform_indices = @transform_4, window_bounds = array<i64: 16, 128>}]} {
    %c0 = arith.constant 0 : index
    %c0_0 = arith.constant 0 : index
    %0 = vector.load %arg1[%c0, %c0_0] : memref<16x1xi32, #tpu.memory_space<vmem>>, vector<16x1xi32>
    %c32_i32 = arith.constant 32 : i32
    %1 = vector.broadcast %c32_i32 : i32 to vector<16x1xi32>
    %2 = arith.cmpi sge, %0, %1 : vector<16x1xi32>
    %c1_i32 = arith.constant 1 : i32
    %3 = vector.broadcast %c1_i32 : i32 to vector<16x1xi32>
    %4 = arith.select %2, %3, %0 : vector<16x1xi1>, vector<16x1xi32>
    %5 = tpu.iota {dimensions = array<i32: 1>} : vector<16x32xi32>
    %6 = vector.broadcast %4 : vector<16x1xi32> to vector<16x32xi32>
    %7 = arith.cmpi eq, %6, %5 : vector<16x32xi32>
    %8 = arith.extui %7 : vector<16x32xi1> to vector<16x32xi32>
    %9 = arith.sitofp %8 : vector<16x32xi32> to vector<16x32xf32>
    %c0_1 = arith.constant 0 : index
    %c0_2 = arith.constant 0 : index
    %10 = vector.load %arg2[%c0_1, %c0_2] : memref<32x32xf32, #tpu.memory_space<vmem>>, vector<32x32xf32>
    %cst = arith.constant dense<0.000000e+00> : vector<16x32xf32>
    %11 = tpu.matmul %9, %10, %cst {dimension_numbers = #tpu.dot_dimension_numbers<[1], [0], [0], [1], [0, 0, 1, 1], [], []>} : vector<16x32xf32>, vector<32x32xf32>, vector<16x32xf32> -> vector<16x32xf32>
    %c0_3 = arith.constant 0 : index
    %c0_4 = arith.constant 0 : index
    %12 = vector.load %arg3[%c0_3, %c0_4] : memref<32x128xf32, #tpu.memory_space<vmem>>, vector<32x128xf32>
    %cst_5 = arith.constant dense<0.000000e+00> : vector<16x128xf32>
    %13 = tpu.matmul %11, %12, %cst_5 {dimension_numbers = #tpu.dot_dimension_numbers<[1], [0], [0], [1], [0, 0, 1, 1], [], []>} : vector<16x32xf32>, vector<32x128xf32>, vector<16x128xf32> -> vector<16x128xf32>
    %c0_6 = arith.constant 0 : index
    %c0_7 = arith.constant 0 : index
    %14 = vector.load %arg4[%c0_6, %c0_7] : memref<1x128xf32, #tpu.memory_space<vmem>>, vector<1x128xf32>
    %15 = vector.broadcast %14 : vector<1x128xf32> to vector<16x128xf32>
    %16 = arith.addf %13, %15 : vector<16x128xf32>
    %c0_8 = arith.constant 0 : index
    %c0_9 = arith.constant 0 : index
    %17 = vector.load %arg5[%c0_8, %c0_9] : memref<16x128xf32, #tpu.memory_space<vmem>>, vector<16x128xf32>
    tpu.vector_store %arg5[%c0_8, %c0_9], %16 {strides = array<i32>} : memref<16x128xf32, #tpu.memory_space<vmem>>, vector<16x128xf32>,
    return
  }
  func.func @transform_0(%arg0: i32) -> (i32, i32) {
    %c0_i32 = arith.constant 0 : i32
    %c0_i32_0 = arith.constant 0 : i32
    return %arg0, %c0_i32 : i32, i32
  }
  func.func @transform_1(%arg0: i32) -> (i32, i32) {
    %c0_i32 = arith.constant 0 : i32
    %c0_i32_0 = arith.constant 0 : i32
    %c0_i32_1 = arith.constant 0 : i32
    return %c0_i32, %c0_i32_0 : i32, i32
  }
  func.func @transform_2(%arg0: i32) -> (i32, i32) {
    %c0_i32 = arith.constant 0 : i32
    %c0_i32_0 = arith.constant 0 : i32
    %c0_i32_1 = arith.constant 0 : i32
    return %c0_i32, %c0_i32_0 : i32, i32
  }
  func.func @transform_3(%arg0: i32) -> (i32, i32) {
    %c0_i32 = arith.constant 0 : i32
    %c0_i32_0 = arith.constant 0 : i32
    %c0_i32_1 = arith.constant 0 : i32
    return %c0_i32, %c0_i32_0 : i32, i32
  }
  func.func @transform_4(%arg0: i32) -> (i32, i32) {
    %c0_i32 = arith.constant 0 : i32
    %c0_i32_0 = arith.constant 0 : i32
    return %arg0, %c0_i32 : i32, i32
  }
}

</mosaic_0001>

<llo_original>
// kernel: tpu_custom_call.1
$region0: #{tpu_custom_call.1}
  #allocation0 [shape = 'u32[]', space=smem, size = 0x4, offset = 0x4, fixed_abs, tag = 'smem constant byte address 0x4 - core index']
  #allocation1 [shape = 'u32[72,128]{1,0:T(1,128)}', space=vmem, size = 0x9000, scoped, tag = 'internal scratch']
  %s0 = inlined_call_operand.vmem [shape: s32[16,1], index: 0, kind: input, shape index: {}]
  %s1 = inlined_call_operand.hbm [shape: f32[32,32], index: 1, kind: input, shape index: {}]
  %s2 = inlined_call_operand.hbm [shape: f32[32,128], index: 2, kind: input, shape index: {}]
  %s3 = inlined_call_operand.vmem [shape: f32[1,128], index: 3, kind: input, shape index: {}]
  %s4 = inlined_call_operand.hbm [shape: f32[16,128], index: 4, kind: output, shape index: {}]
  %s5 = sld [smem:[#allocation0]]
  $region34: #{tpu_custom_call.1} parent=0
    _
  %s7 = ssub.s32 1, %s5
  %s8 = scalar_select 0, %s7, %s5
  $region1: #{tpu_custom_call.1} parent=0
    #allocation2 [shape = 'u8[16384]{0}', space=vmem, size = 0x4000, scoped, tag = 'input window, operand 1, single buffered']
    #allocation3 [shape = 's32[1]{0}', space=sflag, size = 0x4, scoped, tag = 'scoped memory for tpu_custom_call.1']
    #allocation4 [shape = 's32[1]{0}', space=sflag, size = 0x4, scoped, tag = 'scoped memory for tpu_custom_call.1']
    #allocation5 [shape = 'u8[16384]{0}', space=vmem, size = 0x4000, scoped, tag = 'input window, operand 2, single buffered']
    #allocation6 [shape = 's32[1]{0}', space=sflag, size = 0x4, scoped, tag = 'scoped memory for tpu_custom_call.1']
    #allocation7 [shape = 'u8[8192]{0}', space=vmem, size = 0x2000, scoped, tag = 'output window, operand 0, single buffered']
    %9 = vsyncpa [#allocation3], 0
    %10 = vsyncpa [#allocation6], 0
    %11 = vsyncpa [#allocation4], 0
    // Predicated region
    $region2: #{tpu_custom_call.1} parent=1 // pred_check
      _
    $region3: #{tpu_custom_call.1} parent=1 // pred_check_branch
      %13 = sbr.rel (0) target = $region5
    $region4: #{tpu_custom_call.1} parent=1 // pred_region
      _
    $region5: #{tpu_custom_call.1} parent=1 // pred_fallthru
      _
    // Predicated region
    $region6: #{tpu_custom_call.1} parent=1 // pred_check
      _
    $region7: #{tpu_custom_call.1} parent=1 // pred_check_branch
      %15 = sbr.rel (0) target = $region9
    $region8: #{tpu_custom_call.1} parent=1 // pred_region
      %17 = vsyncadd [#allocation3], 0
      %s18 = sshll.u32 %s1, 4
      %s19 = int_to_ptr.hbm [resolvable:$true] %s18
      %s20 = sshll.u32 [#allocation2], 4
      %s21 = int_to_ptr.vmem [resolvable:$true] %s20
      %26 = dma.hbm_to_vmem [thread:$0]  %s19, 512, %s21, [#allocation3], 128, 128, 8
    $region9: #{tpu_custom_call.1} parent=1 // pred_fallthru
      _
    // Predicated region
    $region10: #{tpu_custom_call.1} parent=1 // pred_check
      _
    $region11: #{tpu_custom_call.1} parent=1 // pred_check_branch
      %28 = sbr.rel (0) target = $region13
    $region12: #{tpu_custom_call.1} parent=1 // pred_region
      %30 = vsyncadd [#allocation6], 0
      %s31 = sshll.u32 %s2, 4
      %s32 = int_to_ptr.hbm [resolvable:$true] %s31
      %s33 = sshll.u32 [#allocation5], 4
      %s34 = int_to_ptr.vmem [resolvable:$true] %s33
      %39 = dma.hbm_to_vmem [thread:$0]  %s32, 512, %s34, [#allocation6], 128, 128, 8
    $region13: #{tpu_custom_call.1} parent=1 // pred_fallthru
      _
    // Predicated region
    $region14: #{tpu_custom_call.1} parent=1 // pred_check
      _
    $region15: #{tpu_custom_call.1} parent=1 // pred_check_branch
      %41 = sbr.rel (0) target = $region17
    $region16: #{tpu_custom_call.1} parent=1 // pred_region
      _
    $region17: #{tpu_custom_call.1} parent=1 // pred_fallthru
      _
    // Predicated region
    $region18: #{tpu_custom_call.1} parent=1 // pred_check
      _
    $region19: #{tpu_custom_call.1} parent=1 // pred_check_branch
      %43 = sbr.rel (0) target = $region21
    $region20: #{tpu_custom_call.1} parent=1 // pred_region
      %45 = dma.done [#allocation3], 512
    $region21: #{tpu_custom_call.1} parent=1 // pred_fallthru
      _
    // Predicated region
    $region22: #{tpu_custom_call.1} parent=1 // pred_check
      _
    $region23: #{tpu_custom_call.1} parent=1 // pred_check_branch
      %47 = sbr.rel (0) target = $region25
    $region24: #{tpu_custom_call.1} parent=1 // pred_region
      %49 = dma.done [#allocation6], 512
    $region25: #{tpu_custom_call.1} parent=1 // pred_fallthru
      _
    %v50 = vld [vmem:[%s0] sm:$0xff]
    %v51 = vld [vmem:[%s0 + $0x8] sm:$0xff]
    %vm52 = vcmp.ge.s32.totalorder %v50, 32
    %vm53 = vcmp.ge.s32.totalorder %v51, 32
    %v54 = vsel %vm52, 1, %v50
    %v55 = vsel %vm53, 1, %v51
    %v56 = vlaneseq
    %v57 = vand.u32 %v56, 127
    %58 = vset.pattern.permute.xlu0 0
    %59 = vperm.xlu0 %58, %v54
    %v60 = vpop.permute.xlu0 %59
    %61 = vset.pattern.permute.xlu0 0
    %62 = vperm.xlu0 %61, %v55
    %v63 = vpop.permute.xlu0 %62
    %vm64 = vcmp.eq.s32.totalorder %v60, %v57
    %vm65 = vcmp.eq.s32.totalorder %v63, %v57
    %v66 = vsel %vm64, 1, 0
    %v67 = vsel %vm65, 1, 0
    %v68 = vcvt.s32.f32 %v66
    %v69 = vcvt.s32.f32 %v67
    %v70 = vld [vmem:[#allocation2] sm:$0xff]
    %v71 = vld [vmem:[#allocation2 + $0x8] sm:$0xff]
    %v72 = vld [vmem:[#allocation2 + $0x10] sm:$0xff]
    %v73 = vld [vmem:[#allocation2 + $0x18] sm:$0xff]
    %vm74 = vcmask 261120
    %v76 = vsel %vm74, %v68, 0
    %v79 = vsel %vm74, %v69, 0
    %81 = vmatpush.msra.mxu0 0.0
    %82 = vmatpush.msra.mxu0 0.0
    %83 = vmatpush.msra.mxu0 0.0
    %84 = vmatpush.msra.mxu0 0.0
    %85 = vmatpush.msra.mxu0 0.0
    %86 = vmatpush.msra.mxu0 0.0
    %87 = vmatpush.msra.mxu0 0.0
    %88 = vmatpush.msra.mxu0 0.0
    %89 = vmatpush.msra.mxu0 0.0
    %90 = vmatpush.msra.mxu0 0.0
    %91 = vmatpush.msra.mxu0 0.0
    %92 = vmatpush.msra.mxu0 0.0
    %93 = vmatpush.msra.mxu0 %v73
    %94 = vmatpush.msra.mxu0 %v72
    %95 = vmatpush.msra.mxu0 %v71
    %96 = vmatpush.msra.mxu0 %v70
    %97 = vmatmul.f32.gmra.mxu0 %v76
    %v98 = vpop.f32.mrf.mxu0
    %v99 = vadd.f32 0.0, %v98
    %100 = vmatmul.f32.gmra.mxu0 %v79
    %v101 = vpop.f32.mrf.mxu0
    %v102 = vadd.f32 0.0, %v101
    %103 = vdwg.mxu0
    %v104 = vld [vmem:[#allocation5] sm:$0xff]
    %v105 = vld [vmem:[#allocation5 + $0x8] sm:$0xff]
    %v106 = vld [vmem:[#allocation5 + $0x10] sm:$0xff]
    %v107 = vld [vmem:[#allocation5 + $0x18] sm:$0xff]
    %v108 = vld [vmem:[%s3] sm:$0x1]
    %v110 = vperm.slane %v108, 0
    %v113 = vsel %vm74, %v99, 0
    %v116 = vsel %vm74, %v102, 0
    %118 = vmatpush.msra.mxu0 0.0
    %119 = vmatpush.msra.mxu0 0.0
    %120 = vmatpush.msra.mxu0 0.0
    %121 = vmatpush.msra.mxu0 0.0
    %122 = vmatpush.msra.mxu0 0.0
    %123 = vmatpush.msra.mxu0 0.0
    %124 = vmatpush.msra.mxu0 0.0
    %125 = vmatpush.msra.mxu0 0.0
    %126 = vmatpush.msra.mxu0 0.0
    %127 = vmatpush.msra.mxu0 0.0
    %128 = vmatpush.msra.mxu0 0.0
    %129 = vmatpush.msra.mxu0 0.0
    %130 = vmatpush.msra.mxu0 %v107
    %131 = vmatpush.msra.mxu0 %v106
    %132 = vmatpush.msra.mxu0 %v105
    %133 = vmatpush.msra.mxu0 %v104
    %134 = vmatmul.f32.gmra.mxu0 %v113
    %v135 = vpop.f32.mrf.mxu0
    %v136 = vadd.f32 %v110, %v135
    %137 = vmatmul.f32.gmra.mxu0 %v116
    %v138 = vpop.f32.mrf.mxu0
    %v139 = vadd.f32 %v110, %v138
    %140 = vdwg.mxu0
    %141 = vst [vmem:[#allocation7] sm:$0xff] %v136
    %142 = vst [vmem:[#allocation7 + $0x8] sm:$0xff] %v139
    // Predicated region
    $region26: #{tpu_custom_call.1} parent=1 // pred_check
      _
    $region27: #{tpu_custom_call.1} parent=1 // pred_check_branch
      %144 = sbr.rel (0) target = $region29
    $region28: #{tpu_custom_call.1} parent=1 // pred_region
      %146 = vsyncadd [#allocation4], 0
      %s147 = sshll.u32 [#allocation7], 4
      %s148 = int_to_ptr.vmem [resolvable:$true] %s147
      %s149 = sshll.u32 %s4, 4
      %s150 = int_to_ptr.hbm [resolvable:$true] %s149
      %155 = dma.vmem_to_hbm [thread:$0]  %s148, 256, %s150, [#allocation4], 128, 128, 8
    $region29: #{tpu_custom_call.1} parent=1 // pred_fallthru
      _
    // Predicated region
    $region30: #{tpu_custom_call.1} parent=1 // pred_check
      _
    $region31: #{tpu_custom_call.1} parent=1 // pred_check_branch
      %157 = sbr.rel (0) target = $region33
    $region32: #{tpu_custom_call.1} parent=1 // pred_region
      %159 = dma.done [#allocation4], 256
    $region33: #{tpu_custom_call.1} parent=1 // pred_fallthru
      _
    %160 = vsyncpa [#allocation3], 1
    %161 = vsyncpa [#allocation6], 1
    %162 = vsyncpa [#allocation4], 1

</llo_original>
